<compile_context>
chip_gen: v7x
topology: tpu7x:2x2x1
jax: 0.10.0
libtpu: 0.0.40
codegen_flags: <defaults>
</compile_context>

<pallas_src>
import jax
import jax.numpy as jnp
from jax.experimental import pallas as pl
from jax.experimental.pallas import tpu as pltpu


def _round_up(v, m):
    return ((v + m - 1) // m) * m


def _pad2(a, rows, cols):
    """Zero-pad a 2D array up to (rows, cols); no-op (no HBM pass) if already sized."""
    pr, pc = rows - a.shape[0], cols - a.shape[1]
    if pr == 0 and pc == 0:
        return a
    return jnp.pad(a, ((0, pr), (0, pc)))


# ----------------------------------------------------------------------------
# Kernels
# ----------------------------------------------------------------------------

def _small_block_kernel(x_ref, wmu_ref, wls_ref, ew_ref, bias_ref, o_ref):
    """Whole problem in one VMEM block (grid=()). Exact reparameterized linear."""
    w = wmu_ref[...] + jnp.exp(wls_ref[...]) * ew_ref[...]          # (N, K)
    y = jax.lax.dot_general(
        x_ref[...], w, (((1,), (1,)), ((), ())),                    # x @ w.T
        preferred_element_type=jnp.float32)
    o_ref[...] = (y + bias_ref[...]).astype(o_ref.dtype)


def _tiled_kernel_prng(seed_ref, x_ref, wmu_ref, wls_ref, bias_ref, o_ref, acc_ref):
    """Tiled kernel, eps_w generated on-chip per (tn, tk) weight tile."""
    k = pl.program_id(2)

    @pl.when(k == 0)
    def _():
        acc_ref[...] = jnp.zeros_like(acc_ref)

    j = pl.program_id(1)
    nk = pl.num_programs(2)
    # Seed depends only on (j, k): every M tile regenerates the SAME noise for
    # a given weight tile, so one weight sample is shared by the whole batch.
    pltpu.prng_seed(seed_ref[0] + j * nk + k)
    eps = pltpu.stateful_normal(wmu_ref.shape, jnp.float32)         # (tn, tk)

    # Reparameterized weight tile: exp on the EUP + one VPU FMA per element,
    # both hidden under the HBM DMA bound.
    w = wmu_ref[...] + jnp.exp(wls_ref[...]) * eps                  # (tn, tk)
    acc_ref[...] += jax.lax.dot_general(
        x_ref[...], w, (((1,), (1,)), ((), ())),                    # x @ w.T
        preferred_element_type=jnp.float32)

    @pl.when(k == nk - 1)
    def _():
        o_ref[...] = (acc_ref[...] + bias_ref[...]).astype(o_ref.dtype)


def _tiled_kernel_eps(x_ref, wmu_ref, wls_ref, ew_ref, bias_ref, o_ref, acc_ref):
    """Tiled kernel with an explicitly streamed eps_w (verification / fallback)."""
    k = pl.program_id(2)

    @pl.when(k == 0)
    def _():
        acc_ref[...] = jnp.zeros_like(acc_ref)

    w = wmu_ref[...] + jnp.exp(wls_ref[...]) * ew_ref[...]          # (tn, tk)
    acc_ref[...] += jax.lax.dot_general(
        x_ref[...], w, (((1,), (1,)), ((), ())),
        preferred_element_type=jnp.float32)

    @pl.when(k == pl.num_programs(2) - 1)
    def _():
        o_ref[...] = (acc_ref[...] + bias_ref[...]).astype(o_ref.dtype)


# ----------------------------------------------------------------------------
# Wrappers
# ----------------------------------------------------------------------------

def _tiled_call(x, wmu, wls, eps_w, bias_row, seed, tm, tn, tk, vmem_limit_bytes):
    B, K = x.shape
    N = wmu.shape[0]

    # Clamp tiles to the (padded) problem; tiles stay (8, 128)-aligned.
    tm = min(tm, _round_up(B, 8))
    tk = min(tk, _round_up(K, 128))
    tn = min(tn, _round_up(N, 128))
    Bp, Kp, Np = _round_up(B, tm), _round_up(K, tk), _round_up(N, tn)

    # Padding is exact: padded x columns are zero, so padded weight entries
    # never contribute; padded output rows/cols are sliced off.  _pad2 is a
    # no-op (no extra HBM pass) when shapes already divide the tiles.
    xp = _pad2(x, Bp, Kp)
    wmup = _pad2(wmu, Np, Kp)
    wlsp = _pad2(wls, Np, Kp)
    biasp = _pad2(bias_row, 1, Np)

    grid = (Bp // tm, Np // tn, Kp // tk)
    # `*_` absorbs the scalar-prefetch ref when present.
    x_spec = pl.BlockSpec((tm, tk), lambda i, j, k, *_: (i, k))
    w_spec = pl.BlockSpec((tn, tk), lambda i, j, k, *_: (j, k))   # native (out,in) layout
    b_spec = pl.BlockSpec((1, tn), lambda i, j, k, *_: (0, j))
    o_spec = pl.BlockSpec((tm, tn), lambda i, j, k, *_: (i, j))

    cparams = pltpu.CompilerParams(
        dimension_semantics=("parallel", "parallel", "arbitrary"),
        vmem_limit_bytes=vmem_limit_bytes)
    scratch = [pltpu.VMEM((tm, tn), jnp.float32)]
    out_shape = jax.ShapeDtypeStruct((Bp, Np), x.dtype)

    if eps_w is None:
        try:
            seed_arr = jnp.asarray([seed], dtype=jnp.int32)
            out = pl.pallas_call(
                _tiled_kernel_prng,
                out_shape=out_shape,
                grid_spec=pltpu.PrefetchScalarGridSpec(
                    num_scalar_prefetch=1,
                    grid=grid,
                    in_specs=[x_spec, w_spec, w_spec, b_spec],
                    out_specs=o_spec,
                    scratch_shapes=scratch),
                compiler_params=cparams,
            )(seed_arr, xp, wmup, wlsp, biasp)
            return out[:B, :N]
        except Exception:
            # Fallback if the stateful PRNG path is unavailable on this jax/
            # libtpu: draw eps in the wrapper and stream it (still correct,
            # just one extra weight-sized HBM stream).
            eps_w = jax.random.normal(jax.random.PRNGKey(seed), (N, K), wmu.dtype)

    ewp = _pad2(eps_w.astype(wmu.dtype), Np, Kp)
    out = pl.pallas_call(
        _tiled_kernel_eps,
        out_shape=out_shape,
        grid_spec=pltpu.PrefetchScalarGridSpec(
            num_scalar_prefetch=0,
            grid=grid,
            in_specs=[x_spec, w_spec, w_spec, w_spec, b_spec],
            out_specs=o_spec,
            scratch_shapes=scratch),
        compiler_params=cparams,
    )(xp, wmup, wlsp, ewp, biasp)
    return out[:B, :N]


def bayesian_linear(x, weight_mu, weight_log_sigma, bias_mu, bias_log_sigma,
                    *, eps_w=None, eps_b=None, seed=0,
                    tm=512, tn=512, tk=1024,
                    vmem_limit_bytes=48 * 1024 * 1024,
                    small_path_max_elems=256 * 1024):
    """x: (B, in_features) -> (B, out_features).  Matches F.linear(x, W, b) with
    W, b drawn by the reparameterization trick.  If eps_w/eps_b are None, the
    Gaussian noise is generated on-chip (weight) / from `seed` (bias)."""
    B, in_f = x.shape
    out_f = weight_mu.shape[0]

    key = jax.random.PRNGKey(seed)
    k_w, k_b = jax.random.split(key)
    if eps_b is None:
        eps_b = jax.random.normal(k_b, (out_f,), jnp.float32)

    # Sampled bias: out_f scalars -> compute in the wrapper (negligible) and
    # pass ONE (1, out_f) row instead of three bias streams.
    bias_row = (bias_mu + jnp.exp(bias_log_sigma) * eps_b).astype(jnp.float32)
    bias_row = bias_row.reshape(1, out_f)

    total_elems = B * in_f + 2 * out_f * in_f + B * out_f
    if total_elems <= small_path_max_elems:
        # Small-shape fast path: single grid=() block, no 128-lane padding.
        if eps_w is None:
            eps_w = jax.random.normal(k_w, (out_f, in_f), jnp.float32)
        return pl.pallas_call(
            _small_block_kernel,
            out_shape=jax.ShapeDtypeStruct((B, out_f), x.dtype),
        )(x, weight_mu, weight_log_sigma, eps_w.astype(weight_mu.dtype), bias_row)

    return _tiled_call(x, weight_mu, weight_log_sigma, eps_w, bias_row,
                       seed, tm, tn, tk, vmem_limit_bytes)


def reference(x, weight_mu, weight_log_sigma, eps_w, bias_mu, bias_log_sigma, eps_b):
    w = weight_mu + jnp.exp(weight_log_sigma) * eps_w
    b = bias_mu + jnp.exp(bias_log_sigma) * eps_b
    return x @ w.T + b


if __name__ == "__main__":
    prior_std = 0.1
    key = jax.random.PRNGKey(0)
    ks = jax.random.split(key, 6)

    # ---- 1. Module-native small shapes (in=32, out=16, batch=8): fast path, exact.
    in_f, out_f, batch = 32, 16, 8
    wmu = prior_std * jax.random.normal(ks[0], (out_f, in_f), jnp.float32)
    wls = jnp.full((out_f, in_f), -3.0, jnp.float32)
    bmu = prior_std * jax.random.normal(ks[1], (out_f,), jnp.float32)
    bls = jnp.full((out_f,), -3.0, jnp.float32)
    x = jax.random.normal(ks[2], (batch, in_f), jnp.float32)
    ew = jax.random.normal(ks[3], (out_f, in_f), jnp.float32)
    eb = jax.random.normal(ks[4], (out_f,), jnp.float32)

    y = jax.block_until_ready(
        bayesian_linear(x, wmu, wls, bmu, bls, eps_w=ew, eps_b=eb))
    ref = reference(x, wmu, wls, ew, bmu, bls, eb)
    assert y.shape == (batch, out_f)
    assert jnp.allclose(y, ref, atol=1e-5, rtol=1e-5)

    # ---- 2. Larger shapes through the tiled kernel (streamed eps): exact check.
    B2, K2, N2 = 256, 512, 512
    kb = jax.random.split(ks[5], 5)
    wmu2 = prior_std * jax.random.normal(kb[0], (N2, K2), jnp.float32)
    wls2 = jnp.full((N2, K2), -3.0, jnp.float32)
    bmu2 = prior_std * jax.random.normal(kb[1], (N2,), jnp.float32)
    bls2 = jnp.full((N2,), -3.0, jnp.float32)
    x2 = jax.random.normal(kb[2], (B2, K2), jnp.float32)
    ew2 = jax.random.normal(kb[3], (N2, K2), jnp.float32)
    eb2 = jax.random.normal(kb[4], (N2,), jnp.float32)

    y2 = jax.block_until_ready(
        bayesian_linear(x2, wmu2, wls2, bmu2, bls2, eps_w=ew2, eps_b=eb2,
                        tm=128, tn=256, tk=256))     # grid (2,2,2): exercises K-accum
    ref2 = reference(x2, wmu2, wls2, ew2, bmu2, bls2, eb2)
    assert jnp.allclose(y2, ref2, atol=2e-4, rtol=2e-4)

    # ---- 3. Same shapes, default mode with on-chip weight noise:
    #         deterministic in the seed, seed-sensitive, and statistically sane.
    y3a = bayesian_linear(x2, wmu2, wls2, bmu2, bls2, seed=123, tm=128, tn=256, tk=256)
    y3b = bayesian_linear(x2, wmu2, wls2, bmu2, bls2, seed=123, tm=128, tn=256, tk=256)
    y3c = bayesian_linear(x2, wmu2, wls2, bmu2, bls2, seed=7, tm=128, tn=256, tk=256)
    jax.block_until_ready((y3a, y3b, y3c))
    assert bool(jnp.all(jnp.isfinite(y3a)))
    assert bool(jnp.array_equal(y3a, y3b))
    assert not bool(jnp.array_equal(y3a, y3c))
    y_mean = x2 @ wmu2.T + bmu2
    noise = y3a - y_mean
    expected_std = float(jnp.exp(-3.0) * jnp.sqrt(jnp.mean(jnp.sum(x2 ** 2, axis=1))))
    got_std = float(jnp.std(noise))
    assert 0.2 * expected_std < got_std < 5.0 * expected_std
    assert abs(float(jnp.mean(noise))) < 0.5 * expected_std

    print("KERNEL_OK")
</pallas_src>

<mosaic_0001>
module attributes {stable_mosaic.version = 11 : i64} {
  func.func @_small_block_kernel(%arg0: memref<8x32xf32, #tpu.memory_space<vmem>>, %arg1: memref<16x32xf32, #tpu.memory_space<vmem>>, %arg2: memref<16x32xf32, #tpu.memory_space<vmem>>, %arg3: memref<16x32xf32, #tpu.memory_space<vmem>>, %arg4: memref<1x16xf32, #tpu.memory_space<vmem>>, %arg5: memref<8x16xf32, #tpu.memory_space<vmem>>) attributes {dimension_semantics = [], scalar_prefetch = 0 : i64, scratch_operands = 0 : i64, tpu.core_type = #tpu.core_type<tc>} {
    %c0 = arith.constant 0 : index
    %c0_0 = arith.constant 0 : index
    %0 = vector.load %arg1[%c0, %c0_0] : memref<16x32xf32, #tpu.memory_space<vmem>>, vector<16x32xf32>
    %c0_1 = arith.constant 0 : index
    %c0_2 = arith.constant 0 : index
    %1 = vector.load %arg2[%c0_1, %c0_2] : memref<16x32xf32, #tpu.memory_space<vmem>>, vector<16x32xf32>
    %2 = math.exp %1 : vector<16x32xf32>
    %c0_3 = arith.constant 0 : index
    %c0_4 = arith.constant 0 : index
    %3 = vector.load %arg3[%c0_3, %c0_4] : memref<16x32xf32, #tpu.memory_space<vmem>>, vector<16x32xf32>
    %4 = arith.mulf %2, %3 : vector<16x32xf32>
    %5 = arith.addf %0, %4 : vector<16x32xf32>
    %c0_5 = arith.constant 0 : index
    %c0_6 = arith.constant 0 : index
    %6 = vector.load %arg0[%c0_5, %c0_6] : memref<8x32xf32, #tpu.memory_space<vmem>>, vector<8x32xf32>
    %cst = arith.constant dense<0.000000e+00> : vector<8x16xf32>
    %7 = tpu.matmul %6, %5, %cst {dimension_numbers = #tpu.dot_dimension_numbers<[1], [1], [0], [0], [0, 0, 1, 0], [], []>} : vector<8x32xf32>, vector<16x32xf32>, vector<8x16xf32> -> vector<8x16xf32>
    %c0_7 = arith.constant 0 : index
    %c0_8 = arith.constant 0 : index
    %8 = vector.load %arg4[%c0_7, %c0_8] : memref<1x16xf32, #tpu.memory_space<vmem>>, vector<1x16xf32>
    %9 = vector.broadcast %8 : vector<1x16xf32> to vector<8x16xf32>
    %10 = arith.addf %7, %9 : vector<8x16xf32>
    %c0_9 = arith.constant 0 : index
    %c0_10 = arith.constant 0 : index
    %11 = vector.load %arg5[%c0_9, %c0_10] : memref<8x16xf32, #tpu.memory_space<vmem>>, vector<8x16xf32>
    tpu.vector_store %arg5[%c0_9, %c0_10], %10 {strides = array<i32>} : memref<8x16xf32, #tpu.memory_space<vmem>>, vector<8x16xf32>,
    return
  }
}

</mosaic_0001>

<llo_original>
// kernel: tpu_custom_call.1
$region0: #{tpu_custom_call.1}
  #allocation0 [shape = 'u32[]', space=smem, size = 0x4, offset = 0x4, fixed_abs, tag = 'smem constant byte address 0x4 - core index']
  #allocation1 [shape = 'u32[144,128]{1,0:T(1,128)}', space=vmem, size = 0x12000, scoped, tag = 'internal scratch']
  %s0 = inlined_call_operand.hbm [shape: f32[8,32], index: 0, kind: input, shape index: {}]
  %s1 = inlined_call_operand.hbm [shape: f32[16,32], index: 1, kind: input, shape index: {}]
  %s2 = inlined_call_operand.hbm [shape: f32[16,32], index: 2, kind: input, shape index: {}]
  %s3 = inlined_call_operand.hbm [shape: f32[16,32], index: 3, kind: input, shape index: {}]
  %s4 = inlined_call_operand.vmem [shape: f32[1,16], index: 4, kind: input, shape index: {}]
  %s5 = inlined_call_operand.hbm [shape: f32[8,16], index: 5, kind: output, shape index: {}]
  %s6 = sld [smem:[#allocation0]]
  $region46: #{tpu_custom_call.1} parent=0
    _
  %s8 = ssub.s32 1, %s6
  %s9 = scalar_select 0, %s8, %s6
  $region1: #{tpu_custom_call.1} parent=0
    #allocation2 [shape = 'u8[4096]{0}', space=vmem, size = 0x1000, scoped, tag = 'input window, operand 0, single buffered']
    #allocation3 [shape = 's32[1]{0}', space=sflag, size = 0x4, scoped, tag = 'scoped memory for tpu_custom_call.1']
    #allocation4 [shape = 's32[1]{0}', space=sflag, size = 0x4, scoped, tag = 'scoped memory for tpu_custom_call.1']
    #allocation5 [shape = 'u8[8192]{0}', space=vmem, size = 0x2000, scoped, tag = 'input window, operand 1, single buffered']
    #allocation6 [shape = 's32[1]{0}', space=sflag, size = 0x4, scoped, tag = 'scoped memory for tpu_custom_call.1']
    #allocation7 [shape = 'u8[8192]{0}', space=vmem, size = 0x2000, scoped, tag = 'input window, operand 2, single buffered']
    #allocation8 [shape = 'u8[8192]{0}', space=vmem, size = 0x2000, scoped, tag = 'input window, operand 3, single buffered']
    #allocation9 [shape = 's32[1]{0}', space=sflag, size = 0x4, scoped, tag = 'scoped memory for tpu_custom_call.1']
    #allocation10 [shape = 'u8[4096]{0}', space=vmem, size = 0x1000, scoped, tag = 'output window, operand 0, single buffered']
    %10 = vsyncpa [#allocation3], 0
    %11 = vsyncpa [#allocation6], 0
    %12 = vsyncpa [#allocation9], 0
    %13 = vsyncpa [#allocation4], 0
    // Predicated region
    $region2: #{tpu_custom_call.1} parent=1 // pred_check
      _
    $region3: #{tpu_custom_call.1} parent=1 // pred_check_branch
      %15 = sbr.rel (0) target = $region5
    $region4: #{tpu_custom_call.1} parent=1 // pred_region
      %s17 = ssub.s32 128, 128
      %18 = vsyncadd [#allocation3], %s17
      %s20 = sshll.u32 [#allocation2], 4
      %s21 = int_to_ptr.vmem [resolvable:$true] %s20
      %23 = dma.hbm_to_vmem [thread:$0]  %s0, 128, %s21, [#allocation3]
    $region5: #{tpu_custom_call.1} parent=1 // pred_fallthru
      _
    // Predicated region
    $region6: #{tpu_custom_call.1} parent=1 // pred_check
      _
    $region7: #{tpu_custom_call.1} parent=1 // pred_check_branch
      %25 = sbr.rel (0) target = $region9
    $region8: #{tpu_custom_call.1} parent=1 // pred_region
      %s27 = ssub.s32 256, 256
      %28 = vsyncadd [#allocation6], %s27
      %s29 = sshll.u32 [#allocation5], 4
      %s30 = int_to_ptr.vmem [resolvable:$true] %s29
      %35 = dma.hbm_to_vmem [thread:$0]  %s1, 256, %s30, [#allocation6], 128, 128, 8
    $region9: #{tpu_custom_call.1} parent=1 // pred_fallthru
      _
    // Predicated region
    $region10: #{tpu_custom_call.1} parent=1 // pred_check
      _
    $region11: #{tpu_custom_call.1} parent=1 // pred_check_branch
      %37 = sbr.rel (0) target = $region13
    $region12: #{tpu_custom_call.1} parent=1 // pred_region
      %s39 = ssub.s32 256, 256
      %40 = vsyncadd [#allocation6], %s39
      %s41 = sshll.u32 [#allocation7], 4
      %s42 = int_to_ptr.vmem [resolvable:$true] %s41
      %47 = dma.hbm_to_vmem [thread:$0]  %s2, 256, %s42, [#allocation6], 128, 128, 8
    $region13: #{tpu_custom_call.1} parent=1 // pred_fallthru
      _
    // Predicated region
    $region14: #{tpu_custom_call.1} parent=1 // pred_check
      _
    $region15: #{tpu_custom_call.1} parent=1 // pred_check_branch
      %49 = sbr.rel (0) target = $region17
    $region16: #{tpu_custom_call.1} parent=1 // pred_region
      %s51 = ssub.s32 256, 256
      %52 = vsyncadd [#allocation9], %s51
      %s53 = sshll.u32 [#allocation8], 4
      %s54 = int_to_ptr.vmem [resolvable:$true] %s53
      %59 = dma.hbm_to_vmem [thread:$0]  %s3, 256, %s54, [#allocation9], 128, 128, 8
    $region17: #{tpu_custom_call.1} parent=1 // pred_fallthru
      _
    // Predicated region
    $region18: #{tpu_custom_call.1} parent=1 // pred_check
      _
    $region19: #{tpu_custom_call.1} parent=1 // pred_check_branch
      %61 = sbr.rel (0) target = $region21
    $region20: #{tpu_custom_call.1} parent=1 // pred_region
      _
    $region21: #{tpu_custom_call.1} parent=1 // pred_fallthru
      _
    // Predicated region
    $region22: #{tpu_custom_call.1} parent=1 // pred_check
      _
    $region23: #{tpu_custom_call.1} parent=1 // pred_check_branch
      %63 = sbr.rel (0) target = $region25
    $region24: #{tpu_custom_call.1} parent=1 // pred_region
      %64 = dma.done [#allocation3], 128
    $region25: #{tpu_custom_call.1} parent=1 // pred_fallthru
      _
    // Predicated region
    $region26: #{tpu_custom_call.1} parent=1 // pred_check
      _
    $region27: #{tpu_custom_call.1} parent=1 // pred_check_branch
      %66 = sbr.rel (0) target = $region29
    $region28: #{tpu_custom_call.1} parent=1 // pred_region
      %67 = dma.done [#allocation6], 256
    $region29: #{tpu_custom_call.1} parent=1 // pred_fallthru
      _
    // Predicated region
    $region30: #{tpu_custom_call.1} parent=1 // pred_check
      _
    $region31: #{tpu_custom_call.1} parent=1 // pred_check_branch
      %69 = sbr.rel (0) target = $region33
    $region32: #{tpu_custom_call.1} parent=1 // pred_region
      %70 = dma.done [#allocation6], 256
    $region33: #{tpu_custom_call.1} parent=1 // pred_fallthru
      _
    // Predicated region
    $region34: #{tpu_custom_call.1} parent=1 // pred_check
      _
    $region35: #{tpu_custom_call.1} parent=1 // pred_check_branch
      %72 = sbr.rel (0) target = $region37
    $region36: #{tpu_custom_call.1} parent=1 // pred_region
      %73 = dma.done [#allocation9], 256
    $region37: #{tpu_custom_call.1} parent=1 // pred_fallthru
      _
    %v74 = vld [vmem:[#allocation5] sm:$0xff]
    %v75 = vld [vmem:[#allocation5 + $0x8] sm:$0xff]
    %v76 = vld [vmem:[#allocation7] sm:$0xff]
    %v77 = vld [vmem:[#allocation7 + $0x8] sm:$0xff]
    %v78 = vmul.f32 %v76, 1.442695
    %v79 = vpow.pop %v78
    %v80 = vmul.f32 %v77, 1.442695
    %v81 = vpow.pop %v80
    %v82 = vld [vmem:[#allocation8] sm:$0xff]
    %v83 = vld [vmem:[#allocation8 + $0x8] sm:$0xff]
    %v84 = vmul.f32 %v79, %v82
    %v85 = vmul.f32 %v81, %v83
    %v86 = vadd.f32 %v74, %v84
    %v87 = vadd.f32 %v75, %v85
    %v88 = vld [vmem:[#allocation2] sm:$0xff]
    %v89 = vld [vmem:[%s4] sm:$0x1]
    %v91 = vlaneseq
    %v92 = vshrl.u32 %v91, 7
    %v93 = vsub.s32 0, %v92
    %v94 = vrot.slane %v89, %v93
    %vm96 = vcmask 261120
    %v98 = vsel %vm96, %v88, 0
    %v101 = vsel %vm96, %v86, 0
    %v104 = vsel %vm96, %v87, 0
    %106 = vmatprep.subr.mxu0 0.0
    %107 = vmatpush1.xpose.msra.mxu0 %v101
    %108 = vmatprep.subr.mxu0 0.0
    %109 = vmatpush1.xpose.msra.mxu0 %v104
    %110 = vmatprep.subr.mxu0 0.0
    %111 = vmatpush1.xpose.msra.mxu0 0.0
    %112 = vmatprep.subr.mxu0 0.0
    %113 = vmatpush1.xpose.msra.mxu0 0.0
    %114 = vmatprep.subr.mxu0 0.0
    %115 = vmatpush1.xpose.msra.mxu0 0.0
    %116 = vmatprep.subr.mxu0 0.0
    %117 = vmatpush1.xpose.msra.mxu0 0.0
    %118 = vmatprep.subr.mxu0 0.0
    %119 = vmatpush1.xpose.msra.mxu0 0.0
    %120 = vmatprep.subr.mxu0 0.0
    %121 = vmatpush1.xpose.msra.mxu0 0.0
    %122 = vmatprep.subr.mxu0 0.0
    %123 = vmatpush1.xpose.msra.mxu0 0.0
    %124 = vmatprep.subr.mxu0 0.0
    %125 = vmatpush1.xpose.msra.mxu0 0.0
    %126 = vmatprep.subr.mxu0 0.0
    %127 = vmatpush1.xpose.msra.mxu0 0.0
    %128 = vmatprep.subr.mxu0 0.0
    %129 = vmatpush1.xpose.msra.mxu0 0.0
    %130 = vmatprep.subr.mxu0 0.0
    %131 = vmatpush1.xpose.msra.mxu0 0.0
    %132 = vmatprep.subr.mxu0 0.0
    %133 = vmatpush1.xpose.msra.mxu0 0.0
    %134 = vmatprep.subr.mxu0 0.0
    %135 = vmatpush1.xpose.msra.mxu0 0.0
    %136 = vmatprep.subr.mxu0 0.0
    %137 = vmatpush1.xpose.msra.mxu0 0.0
    %138 = vmatprep.subr.mxu0 0.0
    %139 = vmatpush1.xpose.msra.mxu0 0.0
    %140 = vmatprep.subr.mxu0 0.0
    %141 = vmatpush1.xpose.msra.mxu0 0.0
    %142 = vmatprep.subr.mxu0 0.0
    %143 = vmatpush1.xpose.msra.mxu0 0.0
    %144 = vmatprep.subr.mxu0 0.0
    %145 = vmatpush1.xpose.msra.mxu0 0.0
    %146 = vmatprep.subr.mxu0 0.0
    %147 = vmatpush1.xpose.msra.mxu0 0.0
    %148 = vmatprep.subr.mxu0 0.0
    %149 = vmatpush1.xpose.msra.mxu0 0.0
    %150 = vmatprep.subr.mxu0 0.0
    %151 = vmatpush1.xpose.msra.mxu0 0.0
    %152 = vmatprep.subr.mxu0 0.0
    %153 = vmatpush1.xpose.msra.mxu0 0.0
    %154 = vmatprep.subr.mxu0 0.0
    %155 = vmatpush1.xpose.msra.mxu0 0.0
    %156 = vmatprep.subr.mxu0 0.0
    %157 = vmatpush1.xpose.msra.mxu0 0.0
    %158 = vmatprep.subr.mxu0 0.0
    %159 = vmatpush1.xpose.msra.mxu0 0.0
    %160 = vmatprep.subr.mxu0 0.0
    %161 = vmatpush1.xpose.msra.mxu0 0.0
    %162 = vmatprep.subr.mxu0 0.0
    %163 = vmatpush1.xpose.msra.mxu0 0.0
    %164 = vmatprep.subr.mxu0 0.0
    %165 = vmatpush1.xpose.msra.mxu0 0.0
    %166 = vmatprep.subr.mxu0 0.0
    %167 = vmatpush1.xpose.msra.mxu0 0.0
    %168 = vmatprep.subr.mxu0 0.0
    %169 = vmatpush1.xpose.msra.mxu0 0.0
    %170 = vmatprep.mubr.f32.mxu0 0.0
    %171 = vmatmul.mubr.f32.gmra.mrb[0].mxu0 %v98
    %v172 = vpop.f32.mrb[0].mxu0
    %v173 = vadd.f32 %v94, %v172
    %v174 = vpop.f32.mrb[0].mxu0
    %175 = vdwg.mxu0
    %vm176 = vcmask 130048
    %177 = vst.msk [vmem:[#allocation10] sm:$0xff] %vm176, %v173
    // Predicated region
    $region38: #{tpu_custom_call.1} parent=1 // pred_check
      _
    $region39: #{tpu_custom_call.1} parent=1 // pred_check_branch
      %179 = sbr.rel (0) target = $region41
    $region40: #{tpu_custom_call.1} parent=1 // pred_region
      %s181 = ssub.s32 128, 128
      %182 = vsyncadd [#allocation4], %s181
      %s184 = sshll.u32 [#allocation10], 4
      %s185 = int_to_ptr.vmem [resolvable:$true] %s184
      %187 = dma.vmem_to_hbm [thread:$0]  %s185, 128, %s5, [#allocation4]
    $region41: #{tpu_custom_call.1} parent=1 // pred_fallthru
      _
    // Predicated region
    $region42: #{tpu_custom_call.1} parent=1 // pred_check
      _
    $region43: #{tpu_custom_call.1} parent=1 // pred_check_branch
      %189 = sbr.rel (0) target = $region45
    $region44: #{tpu_custom_call.1} parent=1 // pred_region
      %190 = dma.done [#allocation4], 128
    $region45: #{tpu_custom_call.1} parent=1 // pred_fallthru
      _
    %191 = vsyncpa [#allocation3], 1
    %192 = vsyncpa [#allocation6], 1
    %193 = vsyncpa [#allocation9], 1
    %194 = vsyncpa [#allocation4], 1

</llo_original>
